<compile_context>
chip_gen: v7x
topology: tpu7x:2x2x1
jax: 0.10.0
libtpu: 0.0.40
codegen_flags: <defaults>
</compile_context>

<pallas_src>
import jax
import jax.numpy as jnp
from jax import lax
from jax.experimental import pallas as pl
from jax.experimental.pallas import tpu as pltpu

EPS = 1e-12  # matches l2normalize default


def spectral_norm_conv_kernel(w_ref, u_ref, bias_ref, patches_ref,
                              out_ref, u_out_ref, v_out_ref):
    w = w_ref[...]            # (Cout, width)   == w_bar.view(Cout, -1)
    u = u_ref[...]            # (1, Cout)
    patches = patches_ref[...]  # (width, H*W)  this batch element's im2col

    # --- conv hot path: independent of sigma, MXU can issue immediately ---
    acc = jnp.dot(w, patches, preferred_element_type=jnp.float32)   # (Cout, HW)

    # --- one power iteration (power_iterations=1); tiny, overlaps with MXU ---
    # v = l2normalize(W^T u)
    wt_u = jnp.dot(u, w, preferred_element_type=jnp.float32)        # (1, width)
    inv_vn = pl.reciprocal(
        jnp.sqrt(jnp.sum(wt_u * wt_u, keepdims=True)) + EPS, approx=False)
    v = wt_u * inv_vn                                               # (1, width)
    # u = l2normalize(W v)   (contract over width, no explicit transpose)
    wv = lax.dot_general(v, w, (((1,), (1,)), ((), ())),
                         preferred_element_type=jnp.float32)        # (1, Cout)
    inv_un = pl.reciprocal(
        jnp.sqrt(jnp.sum(wv * wv, keepdims=True)) + EPS, approx=False)
    u_new = wv * inv_un                                             # (1, Cout)

    # sigma = u . (W v)  -> scale the accumulator instead of the weights
    sigma = jnp.sum(u_new * wv, keepdims=True)                      # (1, 1)
    inv_sigma = pl.reciprocal(sigma, approx=False)

    # fused epilogue: one pass over the accumulator (scale + bias)
    out_ref[...] = acc * inv_sigma + bias_ref[...]                  # (Cout, HW)

    u_out_ref[...] = u_new
    v_out_ref[...] = v


def spectral_norm_conv2d(x_nchw, w_bar, bias, u, kh=3, kw=3, pad=1):
    """Forward of SpectralNorm(Conv2d(Cin, Cout, 3, padding=1)).

    Returns (y_nchw, u_new, v_new) — u/v are the in-place-updated buffers.
    """
    N, C, H, W = x_nchw.shape
    Cout = w_bar.shape[0]
    width = C * kh * kw
    HW = H * W

    # im2col (glue, plain JAX). Flattening order (in_c, kh, kw) matches
    # PyTorch's w.view(Cout, -1); layout (N, width, HW) is a pure reshape.
    # TODO(synk): for production conv sizes, replace im2col with 9 shifted
    # in-kernel matmuls to avoid the KH*KW x HBM blowup.
    xp = jnp.pad(x_nchw, ((0, 0), (0, 0), (pad, pad), (pad, pad)))
    cols = []
    for di in range(kh):
        for dj in range(kw):
            cols.append(xp[:, :, di:di + H, dj:dj + W])             # (N, C, H, W)
    patches = jnp.stack(cols, axis=2)                               # (N, C, kh*kw, H, W)
    patches = patches.reshape(N, width, HW).astype(jnp.float32)     # (N, width, HW)

    w_mat = w_bar.reshape(Cout, width).astype(jnp.float32)
    u2 = u.reshape(1, Cout).astype(jnp.float32)
    b2 = bias.reshape(Cout, 1).astype(jnp.float32)                  # broadcast along lanes

    out, u_new, v_new = pl.pallas_call(
        spectral_norm_conv_kernel,
        out_shape=(jax.ShapeDtypeStruct((N, Cout, HW), jnp.float32),
                   jax.ShapeDtypeStruct((N, 1, Cout), jnp.float32),
                   jax.ShapeDtypeStruct((N, 1, width), jnp.float32)),
        grid=(N,),
        in_specs=[
            pl.BlockSpec((Cout, width), lambda n: (0, 0)),          # W (resident)
            pl.BlockSpec((1, Cout), lambda n: (0, 0)),              # u (resident)
            pl.BlockSpec((Cout, 1), lambda n: (0, 0)),              # bias (resident)
            pl.BlockSpec((None, width, HW), lambda n: (n, 0, 0)),   # per-batch patches
        ],
        out_specs=(
            pl.BlockSpec((None, Cout, HW), lambda n: (n, 0, 0)),    # lane-dense output
            pl.BlockSpec((None, 1, Cout), lambda n: (n, 0, 0)),
            pl.BlockSpec((None, 1, width), lambda n: (n, 0, 0)),
        ),
        compiler_params=pltpu.CompilerParams(
            dimension_semantics=("parallel",)),
    )(w_mat, u2, b2, patches)

    # (N, Cout, HW) is already NCHW-contiguous: reshape only, no transpose.
    y = out.reshape(N, Cout, H, W)
    return y, u_new[0, 0], v_new[0, 0]


if __name__ == "__main__":
    key = jax.random.PRNGKey(0)
    kx, kw_, ku, kv, kb = jax.random.split(key, 5)

    # SpectralNorm(Conv2d(4, 8, kernel_size=3, padding=1))
    N, Cin, H, W = 2, 4, 16, 16
    Cout, KH, KW = 8, 3, 3

    x = jax.random.normal(kx, (N, Cin, H, W), jnp.float32)
    w_bar = jax.random.normal(kw_, (Cout, Cin, KH, KW), jnp.float32) * 0.1
    bias = jax.random.normal(kb, (Cout,), jnp.float32) * 0.1

    # u buffer, l2-normalized at init (as in _make_params)
    u0 = jax.random.normal(ku, (Cout,), jnp.float32)
    u0 = u0 / (jnp.linalg.norm(u0) + EPS)
    # v buffer also exists in the module but is fully overwritten before first
    # use in forward, so its init does not affect the output.

    y, u_new, v_new = spectral_norm_conv2d(x, w_bar, bias, u0)
    jax.block_until_ready((y, u_new, v_new))

    # --- pure-JAX reference of the same forward ---
    w_mat = w_bar.reshape(Cout, -1)
    v_ref = w_mat.T @ u0
    v_ref = v_ref / (jnp.linalg.norm(v_ref) + EPS)
    u_ref = w_mat @ v_ref
    u_ref = u_ref / (jnp.linalg.norm(u_ref) + EPS)
    sigma = u_ref @ (w_mat @ v_ref)
    w_sn = w_bar / sigma
    y_ref = lax.conv_general_dilated(
        x, w_sn, window_strides=(1, 1), padding=((1, 1), (1, 1)),
        dimension_numbers=("NCHW", "OIHW", "NCHW"))
    y_ref = y_ref + bias.reshape(1, Cout, 1, 1)

    assert y.shape == (N, Cout, H, W)
    assert jnp.allclose(y, y_ref, atol=1e-3, rtol=1e-3)
    assert jnp.allclose(u_new, u_ref, atol=1e-4, rtol=1e-4)
    assert jnp.allclose(v_new, v_ref, atol=1e-4, rtol=1e-4)
    print("KERNEL_OK")
</pallas_src>

<mosaic_0001>
module attributes {stable_mosaic.version = 11 : i64} {
  func.func @spectral_norm_conv_kernel(%arg0: i32, %arg1: memref<8x36xf32, #tpu.memory_space<vmem>>, %arg2: memref<1x8xf32, #tpu.memory_space<vmem>>, %arg3: memref<8x1xf32, #tpu.memory_space<vmem>>, %arg4: memref<1x36x256xf32, #tpu.memory_space<vmem>>, %arg5: memref<1x8x256xf32, #tpu.memory_space<vmem>>, %arg6: memref<1x1x8xf32, #tpu.memory_space<vmem>>, %arg7: memref<1x1x36xf32, #tpu.memory_space<vmem>>) attributes {dimension_semantics = [#tpu.dimension_semantics<parallel>], iteration_bounds = array<i64: 2>, scalar_prefetch = 0 : i64, scratch_operands = 0 : i64, tpu.core_type = #tpu.core_type<tc>, window_params = [{pipeline_mode = #tpu.pipeline_mode<synchronous>, transform_indices = @transform_0, window_bounds = array<i64: 8, 36>}, {pipeline_mode = #tpu.pipeline_mode<synchronous>, transform_indices = @transform_1, window_bounds = array<i64: 1, 8>}, {pipeline_mode = #tpu.pipeline_mode<synchronous>, transform_indices = @transform_2, window_bounds = array<i64: 8, 1>}, {transform_indices = @transform_3, window_bounds = array<i64: 1, 36, 256>}, {transform_indices = @transform_4, window_bounds = array<i64: 1, 8, 256>}, {transform_indices = @transform_5, window_bounds = array<i64: 1, 1, 8>}, {transform_indices = @transform_6, window_bounds = array<i64: 1, 1, 36>}]} {
    %c0 = arith.constant 0 : index
    %c0_0 = arith.constant 0 : index
    %0 = vector.load %arg1[%c0, %c0_0] : memref<8x36xf32, #tpu.memory_space<vmem>>, vector<8x36xf32>
    %c0_1 = arith.constant 0 : index
    %c0_2 = arith.constant 0 : index
    %1 = vector.load %arg2[%c0_1, %c0_2] : memref<1x8xf32, #tpu.memory_space<vmem>>, vector<1x8xf32>
    %c0_3 = arith.constant 0 : index
    %c0_4 = arith.constant 0 : index
    %c0_5 = arith.constant 0 : index
    %2 = vector.load %arg4[%c0_3, %c0_4, %c0_5] : memref<1x36x256xf32, #tpu.memory_space<vmem>>, vector<1x36x256xf32>
    %3 = vector.shape_cast %2 : vector<1x36x256xf32> to vector<36x256xf32>
    %cst = arith.constant dense<0.000000e+00> : vector<8x256xf32>
    %4 = tpu.matmul %0, %3, %cst {dimension_numbers = #tpu.dot_dimension_numbers<[1], [0], [0], [1], [0, 0, 1, 1], [], []>} : vector<8x36xf32>, vector<36x256xf32>, vector<8x256xf32> -> vector<8x256xf32>
    %cst_6 = arith.constant dense<0.000000e+00> : vector<1x36xf32>
    %5 = tpu.matmul %1, %0, %cst_6 {dimension_numbers = #tpu.dot_dimension_numbers<[1], [0], [0], [1], [0, 0, 1, 1], [], []>} : vector<1x8xf32>, vector<8x36xf32>, vector<1x36xf32> -> vector<1x36xf32>
    %6 = arith.mulf %5, %5 : vector<1x36xf32>
    %7 = vector.shape_cast %6 : vector<1x36xf32> to vector<1x1x36xf32>
    %cst_7 = arith.constant dense<0.000000e+00> : vector<1xf32>
    %8 = vector.multi_reduction <add>, %7, %cst_7 [1, 2] : vector<1x1x36xf32> to vector<1xf32>
    %9 = vector.shape_cast %8 : vector<1xf32> to vector<1x1x1xf32>
    %10 = vector.extract %9[0, 0, 0] : f32 from vector<1x1x1xf32>
    %11 = vector.broadcast %10 : f32 to vector<1x1xf32>
    %12 = math.sqrt %11 : vector<1x1xf32>
    %cst_8 = arith.constant 9.99999996E-13 : f32
    %13 = vector.broadcast %cst_8 : f32 to vector<1x1xf32>
    %14 = arith.addf %12, %13 : vector<1x1xf32>
    %15 = tpu.reciprocal %14 : vector<1x1xf32> -> vector<1x1xf32>
    %16 = vector.broadcast %15 : vector<1x1xf32> to vector<1x36xf32>
    %17 = arith.mulf %5, %16 : vector<1x36xf32>
    %cst_9 = arith.constant dense<0.000000e+00> : vector<1x8xf32>
    %18 = tpu.matmul %17, %0, %cst_9 {dimension_numbers = #tpu.dot_dimension_numbers<[1], [1], [0], [0], [0, 0, 1, 0], [], []>} : vector<1x36xf32>, vector<8x36xf32>, vector<1x8xf32> -> vector<1x8xf32>
    %19 = arith.mulf %18, %18 : vector<1x8xf32>
    %20 = vector.shape_cast %19 : vector<1x8xf32> to vector<1x1x8xf32>
    %cst_10 = arith.constant dense<0.000000e+00> : vector<1xf32>
    %21 = vector.multi_reduction <add>, %20, %cst_10 [1, 2] : vector<1x1x8xf32> to vector<1xf32>
    %22 = vector.shape_cast %21 : vector<1xf32> to vector<1x1x1xf32>
    %23 = vector.extract %22[0, 0, 0] : f32 from vector<1x1x1xf32>
    %24 = vector.broadcast %23 : f32 to vector<1x1xf32>
    %25 = math.sqrt %24 : vector<1x1xf32>
    %cst_11 = arith.constant 9.99999996E-13 : f32
    %26 = vector.broadcast %cst_11 : f32 to vector<1x1xf32>
    %27 = arith.addf %25, %26 : vector<1x1xf32>
    %28 = tpu.reciprocal %27 : vector<1x1xf32> -> vector<1x1xf32>
    %29 = vector.broadcast %28 : vector<1x1xf32> to vector<1x8xf32>
    %30 = arith.mulf %18, %29 : vector<1x8xf32>
    %31 = arith.mulf %30, %18 : vector<1x8xf32>
    %32 = vector.shape_cast %31 : vector<1x8xf32> to vector<1x1x8xf32>
    %cst_12 = arith.constant dense<0.000000e+00> : vector<1xf32>
    %33 = vector.multi_reduction <add>, %32, %cst_12 [1, 2] : vector<1x1x8xf32> to vector<1xf32>
    %34 = vector.shape_cast %33 : vector<1xf32> to vector<1x1x1xf32>
    %35 = vector.extract %34[0, 0, 0] : f32 from vector<1x1x1xf32>
    %36 = vector.broadcast %35 : f32 to vector<1x1xf32>
    %37 = tpu.reciprocal %36 : vector<1x1xf32> -> vector<1x1xf32>
    %38 = vector.broadcast %37 : vector<1x1xf32> to vector<8x256xf32>
    %39 = arith.mulf %4, %38 : vector<8x256xf32>
    %c0_13 = arith.constant 0 : index
    %c0_14 = arith.constant 0 : index
    %40 = vector.load %arg3[%c0_13, %c0_14] : memref<8x1xf32, #tpu.memory_space<vmem>>, vector<8x1xf32>
    %41 = vector.broadcast %40 : vector<8x1xf32> to vector<8x256xf32>
    %42 = arith.addf %39, %41 : vector<8x256xf32>
    %c0_15 = arith.constant 0 : index
    %c0_16 = arith.constant 0 : index
    %c0_17 = arith.constant 0 : index
    %43 = vector.load %arg5[%c0_15, %c0_16, %c0_17] : memref<1x8x256xf32, #tpu.memory_space<vmem>>, vector<1x8x256xf32>
    %44 = vector.shape_cast %43 : vector<1x8x256xf32> to vector<8x256xf32>
    %45 = vector.shape_cast %42 : vector<8x256xf32> to vector<1x8x256xf32>
    tpu.vector_store %arg5[%c0_15, %c0_16, %c0_17], %45 {strides = array<i32>} : memref<1x8x256xf32, #tpu.memory_space<vmem>>, vector<1x8x256xf32>,
    %c0_18 = arith.constant 0 : index
    %c0_19 = arith.constant 0 : index
    %c0_20 = arith.constant 0 : index
    %46 = vector.load %arg6[%c0_18, %c0_19, %c0_20] : memref<1x1x8xf32, #tpu.memory_space<vmem>>, vector<1x1x8xf32>
    %47 = vector.shape_cast %46 : vector<1x1x8xf32> to vector<1x8xf32>
    %48 = vector.shape_cast %30 : vector<1x8xf32> to vector<1x1x8xf32>
    tpu.vector_store %arg6[%c0_18, %c0_19, %c0_20], %48 {strides = array<i32>} : memref<1x1x8xf32, #tpu.memory_space<vmem>>, vector<1x1x8xf32>,
    %c0_21 = arith.constant 0 : index
    %c0_22 = arith.constant 0 : index
    %c0_23 = arith.constant 0 : index
    %49 = vector.load %arg7[%c0_21, %c0_22, %c0_23] : memref<1x1x36xf32, #tpu.memory_space<vmem>>, vector<1x1x36xf32>
    %50 = vector.shape_cast %49 : vector<1x1x36xf32> to vector<1x36xf32>
    %51 = vector.shape_cast %17 : vector<1x36xf32> to vector<1x1x36xf32>
    tpu.vector_store %arg7[%c0_21, %c0_22, %c0_23], %51 {strides = array<i32>} : memref<1x1x36xf32, #tpu.memory_space<vmem>>, vector<1x1x36xf32>,
    return
  }
  func.func @transform_0(%arg0: i32) -> (i32, i32) {
    %c0_i32 = arith.constant 0 : i32
    %c0_i32_0 = arith.constant 0 : i32
    %c0_i32_1 = arith.constant 0 : i32
    return %c0_i32, %c0_i32_0 : i32, i32
  }
  func.func @transform_1(%arg0: i32) -> (i32, i32) {
    %c0_i32 = arith.constant 0 : i32
    %c0_i32_0 = arith.constant 0 : i32
    %c0_i32_1 = arith.constant 0 : i32
    return %c0_i32, %c0_i32_0 : i32, i32
  }
  func.func @transform_2(%arg0: i32) -> (i32, i32) {
    %c0_i32 = arith.constant 0 : i32
    %c0_i32_0 = arith.constant 0 : i32
    %c0_i32_1 = arith.constant 0 : i32
    return %c0_i32, %c0_i32_0 : i32, i32
  }
  func.func @transform_3(%arg0: i32) -> (i32, i32, i32) {
    %c0_i32 = arith.constant 0 : i32
    %c0_i32_0 = arith.constant 0 : i32
    %c0_i32_1 = arith.constant 0 : i32
    return %arg0, %c0_i32, %c0_i32_0 : i32, i32, i32
  }
  func.func @transform_4(%arg0: i32) -> (i32, i32, i32) {
    %c0_i32 = arith.constant 0 : i32
    %c0_i32_0 = arith.constant 0 : i32
    %c0_i32_1 = arith.constant 0 : i32
    return %arg0, %c0_i32, %c0_i32_0 : i32, i32, i32
  }
  func.func @transform_5(%arg0: i32) -> (i32, i32, i32) {
    %c0_i32 = arith.constant 0 : i32
    %c0_i32_0 = arith.constant 0 : i32
    %c0_i32_1 = arith.constant 0 : i32
    return %arg0, %c0_i32, %c0_i32_0 : i32, i32, i32
  }
  func.func @transform_6(%arg0: i32) -> (i32, i32, i32) {
    %c0_i32 = arith.constant 0 : i32
    %c0_i32_0 = arith.constant 0 : i32
    %c0_i32_1 = arith.constant 0 : i32
    return %arg0, %c0_i32, %c0_i32_0 : i32, i32, i32
  }
}

</mosaic_0001>

<llo_original>
// kernel: tpu_custom_call.1
$region0: #{tpu_custom_call.1}
  #allocation0 [shape = 'u32[]', space=smem, size = 0x4, offset = 0x4, fixed_abs, tag = 'smem constant byte address 0x4 - core index']
  #allocation1 [shape = 'u32[144,128]{1,0:T(1,128)}', space=vmem, size = 0x12000, scoped, tag = 'internal scratch']
  %s0 = inlined_call_operand.vmem [shape: f32[8,36], index: 0, kind: input, shape index: {}]
  %s1 = inlined_call_operand.vmem [shape: f32[1,8], index: 1, kind: input, shape index: {}]
  %s2 = inlined_call_operand.vmem [shape: f32[8,1], index: 2, kind: input, shape index: {}]
  %s3 = inlined_call_operand.vmem [shape: f32[2,36,256], index: 3, kind: input, shape index: {}]
  %s4 = inlined_call_operand.hbm [shape: f32[2,8,256], index: 4, kind: output, shape index: {0}]
  %s5 = inlined_call_operand.hbm [shape: f32[2,1,8], index: 5, kind: output, shape index: {1}]
  %s6 = inlined_call_operand.hbm [shape: f32[2,1,36], index: 6, kind: output, shape index: {2}]
  %7 = xla_tuple %s4, %s5, %s6
  %s8 = sld [smem:[#allocation0]]
  $region65: #{tpu_custom_call.1} parent=0
    _
  %s10 = ssub.s32 1, %s8
  %s11 = scalar_select 0, %s10, %s8
  $region1: #{tpu_custom_call.1} parent=0
    #allocation2 [shape = 'u8[16384]{0}', space=vmem, size = 0x4000, scoped, tag = 'output window, operand 0']
    #allocation3 [shape = 's32[2]{0}', space=sflag, size = 0x8, scoped, tag = 'scoped memory for tpu_custom_call.1']
    #allocation4 [shape = 'u8[1024]{0}', space=vmem, size = 0x400, scoped, tag = 'output window, operand 1']
    #allocation5 [shape = 's32[2]{0}', space=sflag, size = 0x8, scoped, tag = 'scoped memory for tpu_custom_call.1']
    #allocation6 [shape = 'u8[1024]{0}', space=vmem, size = 0x400, scoped, tag = 'output window, operand 2']
    %12 = vsyncpa [#allocation3], 0
    %s13 = scalar_lea.sflag [#allocation3], 1
    %14 = vsyncpa %s13, 0
    %15 = vsyncpa [#allocation5], 0
    %s16 = scalar_lea.sflag [#allocation5], 1
    %17 = vsyncpa %s16, 0
    loop: start=0, step=1, limit=4
    $region2: #{tpu_custom_call.1} parent=1 // loop_pre_header
      _
    $region3: #{tpu_custom_call.1} parent=1 // loop_header
      %s19 = sphi 0, %s23
      %p20 = scmp.ge.s32.totalorder %s19, 4
      %s27 = sphi 0, %s27
      %s29 = sphi 0, %s27
      %s30 = sphi 0, %s29
      %s44 = sphi 0, %s30
      %s48 = sphi 0, %s48
      %s50 = sphi 0, %s48
      %s51 = sphi 0, %s50
      %s65 = sphi 0, %s51
      %s69 = sphi 0, %s69
      %s71 = sphi 0, %s69
      %s72 = sphi 0, %s71
      %s86 = sphi 0, %s72
      %s92 = sphi 0, %s94
      %s95 = sphi 0, %s92
      %s96 = sphi 0, %s95
      %s112 = sphi 0, %s96
      %s118 = sphi 0, %s120
      %s121 = sphi 0, %s118
      %s122 = sphi 0, %s121
      %s138 = sphi 0, %s122
      %s144 = sphi 0, %s146
      %s147 = sphi 0, %s144
      %s148 = sphi 0, %s147
      %s164 = sphi 0, %s148
      %s170 = sphi 0, %s172
      %s173 = sphi 0, %s170
      %s174 = sphi 0, %s173
      %s190 = sphi 0, %s174
    $region4: #{tpu_custom_call.1} parent=1 // loop_header_branch
      %22 = sbr.rel (%p20) target = $region8
    $region5: #{tpu_custom_call.1} parent=1 // loop_body
      %s24 = ssub.s32 %s19, 1
      %s25 = ssub.s32 %s19, 2
      %s26 = sadd.s32 %s19, 1
      %s28 = sadd.s32 %s27, 1
      %p31 = scmp.eq.s32.totalorder %s19, 1
      %p32 = scmp.ne.s32.totalorder %s27, %s29
      %p33 = scmp.eq.s32.totalorder %s19, 0
      %p34 = por %p32, %p33
      %p35 = scmp.ne.s32.totalorder %s27, %s29
      %p36 = scmp.eq.s32.totalorder %s24, 1
      %p37 = por %p35, %p36
      %p38 = scmp.ne.s32.totalorder %s29, %s30
      %p39 = scmp.eq.s32.totalorder %s24, 0
      %p40 = por %p38, %p39
      %p41 = scmp.ne.s32.totalorder %s29, %s30
      %p42 = scmp.eq.s32.totalorder %s25, 1
      %p43 = por %p41, %p42
      %p45 = scmp.ne.s32.totalorder %s30, %s44
      %p46 = scmp.eq.s32.totalorder %s25, 0
      %p47 = por %p45, %p46
      %s49 = sadd.s32 %s48, 1
      %p52 = scmp.eq.s32.totalorder %s19, 1
      %p53 = scmp.ne.s32.totalorder %s48, %s50
      %p54 = scmp.eq.s32.totalorder %s19, 0
      %p55 = por %p53, %p54
      %p56 = scmp.ne.s32.totalorder %s48, %s50
      %p57 = scmp.eq.s32.totalorder %s24, 1
      %p58 = por %p56, %p57
      %p59 = scmp.ne.s32.totalorder %s50, %s51
      %p60 = scmp.eq.s32.totalorder %s24, 0
      %p61 = por %p59, %p60
      %p62 = scmp.ne.s32.totalorder %s50, %s51
      %p63 = scmp.eq.s32.totalorder %s25, 1
      %p64 = por %p62, %p63
      %p66 = scmp.ne.s32.totalorder %s51, %s65
      %p67 = scmp.eq.s32.totalorder %s25, 0
      %p68 = por %p66, %p67
      %s70 = sadd.s32 %s69, 1
      %p73 = scmp.eq.s32.totalorder %s19, 1
      %p74 = scmp.ne.s32.totalorder %s69, %s71
      %p75 = scmp.eq.s32.totalorder %s19, 0
      %p76 = por %p74, %p75
      %p77 = scmp.ne.s32.totalorder %s69, %s71
      %p78 = scmp.eq.s32.totalorder %s24, 1
      %p79 = por %p77, %p78
      %p80 = scmp.ne.s32.totalorder %s71, %s72
      %p81 = scmp.eq.s32.totalorder %s24, 0
      %p82 = por %p80, %p81
      %p83 = scmp.ne.s32.totalorder %s71, %s72
      %p84 = scmp.eq.s32.totalorder %s25, 1
      %p85 = por %p83, %p84
      %p87 = scmp.ne.s32.totalorder %s72, %s86
      %p88 = scmp.eq.s32.totalorder %s25, 0
      %p89 = por %p87, %p88
      %s90 = ssub.s32 %s19, %s26
      %p91 = scmp.eq.s32.totalorder %s90, 0
      %s93 = sadd.s32 %s92, 1
      %s94 = scalar_select %p91, %s92, %s93
      %p97 = pneg %p91
      %p98 = scmp.eq.s32.totalorder %s19, 1
      %p99 = por %p97, %p98
      %p100 = scmp.ne.s32.totalorder %s92, %s95
      %p101 = scmp.eq.s32.totalorder %s19, 0
      %p102 = por %p100, %p101
      %p103 = scmp.ne.s32.totalorder %s92, %s95
      %p104 = scmp.eq.s32.totalorder %s24, 1
      %p105 = por %p103, %p104
      %p106 = scmp.ne.s32.totalorder %s95, %s96
      %p107 = scmp.eq.s32.totalorder %s24, 0
      %p108 = por %p106, %p107
      %p109 = scmp.ne.s32.totalorder %s95, %s96
      %p110 = scmp.eq.s32.totalorder %s25, 1
      %p111 = por %p109, %p110
      %p113 = scmp.ne.s32.totalorder %s96, %s112
      %p114 = scmp.eq.s32.totalorder %s25, 0
      %p115 = por %p113, %p114
      %s116 = ssub.s32 %s19, %s26
      %p117 = scmp.eq.s32.totalorder %s116, 0
      %s119 = sadd.s32 %s118, 1
      %s120 = scalar_select %p117, %s118, %s119
      %p123 = pneg %p117
      %p124 = scmp.eq.s32.totalorder %s19, 1
      %p125 = por %p123, %p124
      %p126 = scmp.ne.s32.totalorder %s118, %s121
      %p127 = scmp.eq.s32.totalorder %s19, 0
      %p128 = por %p126, %p127
      %p129 = scmp.ne.s32.totalorder %s118, %s121
      %p130 = scmp.eq.s32.totalorder %s24, 1
      %p131 = por %p129, %p130
      %p132 = scmp.ne.s32.totalorder %s121, %s122
      %p133 = scmp.eq.s32.totalorder %s24, 0
      %p134 = por %p132, %p133
      %p135 = scmp.ne.s32.totalorder %s121, %s122
      %p136 = scmp.eq.s32.totalorder %s25, 1
      %p137 = por %p135, %p136
      %p139 = scmp.ne.s32.totalorder %s122, %s138
      %p140 = scmp.eq.s32.totalorder %s25, 0
      %p141 = por %p139, %p140
      %s142 = ssub.s32 %s19, %s26
      %p143 = scmp.eq.s32.totalorder %s142, 0
      %s145 = sadd.s32 %s144, 1
      %s146 = scalar_select %p143, %s144, %s145
      %p149 = pneg %p143
      %p150 = scmp.eq.s32.totalorder %s19, 1
      %p151 = por %p149, %p150
      %p152 = scmp.ne.s32.totalorder %s144, %s147
      %p153 = scmp.eq.s32.totalorder %s19, 0
      %p154 = por %p152, %p153
      %p155 = scmp.ne.s32.totalorder %s144, %s147
      %p156 = scmp.eq.s32.totalorder %s24, 1
      %p157 = por %p155, %p156
      %p158 = scmp.ne.s32.totalorder %s147, %s148
      %p159 = scmp.eq.s32.totalorder %s24, 0
      %p160 = por %p158, %p159
      %p161 = scmp.ne.s32.totalorder %s147, %s148
      %p162 = scmp.eq.s32.totalorder %s25, 1
      %p163 = por %p161, %p162
      %p165 = scmp.ne.s32.totalorder %s148, %s164
      %p166 = scmp.eq.s32.totalorder %s25, 0
      %p167 = por %p165, %p166
      %s168 = ssub.s32 %s19, %s26
      %p169 = scmp.eq.s32.totalorder %s168, 0
      %s171 = sadd.s32 %s170, 1
      %s172 = scalar_select %p169, %s170, %s171
      %p175 = pneg %p169
      %p176 = scmp.eq.s32.totalorder %s19, 1
      %p177 = por %p175, %p176
      %p178 = scmp.ne.s32.totalorder %s170, %s173
      %p179 = scmp.eq.s32.totalorder %s19, 0
      %p180 = por %p178, %p179
      %p181 = scmp.ne.s32.totalorder %s170, %s173
      %p182 = scmp.eq.s32.totalorder %s24, 1
      %p183 = por %p181, %p182
      %p184 = scmp.ne.s32.totalorder %s173, %s174
      %p185 = scmp.eq.s32.totalorder %s24, 0
      %p186 = por %p184, %p185
      %p187 = scmp.ne.s32.totalorder %s173, %s174
      %p188 = scmp.eq.s32.totalorder %s25, 1
      %p189 = por %p187, %p188
      %p191 = scmp.ne.s32.totalorder %s174, %s190
      %p192 = scmp.eq.s32.totalorder %s25, 0
      %p193 = por %p191, %p192
      %p194 = scmp.le.s32.totalorder 1, %s19
      %p195 = scmp.lt.s32.totalorder %s19, 3
      %p196 = pnand %p194, %p195
      %p197 = pneg %p196
      // Predicated region
      $region9: #{tpu_custom_call.1} parent=5 // pred_check
        _
      $region10: #{tpu_custom_call.1} parent=5 // pred_check_branch
        %199 = sbr.rel (%p196) target = $region12
      $region11: #{tpu_custom_call.1} parent=5 // pred_region
        %s200 = ssub.s32 %s19, 1
        // Predicated region
        $region13: #{tpu_custom_call.1} parent=11 // pred_check
          %p201 = pneg %p40
        $region14: #{tpu_custom_call.1} parent=11 // pred_check_branch
          %203 = sbr.rel (%p201) target = $region16
        $region15: #{tpu_custom_call.1} parent=11 // pred_region
          _
        $region16: #{tpu_custom_call.1} parent=11 // pred_fallthru
          _
        // Predicated region
        $region17: #{tpu_custom_call.1} parent=11 // pred_check
          %p204 = pneg %p61
        $region18: #{tpu_custom_call.1} parent=11 // pred_check_branch
          %206 = sbr.rel (%p204) target = $region20
        $region19: #{tpu_custom_call.1} parent=11 // pred_region
          _
        $region20: #{tpu_custom_call.1} parent=11 // pred_fallthru
          _
        // Predicated region
        $region21: #{tpu_custom_call.1} parent=11 // pred_check
          %p207 = pneg %p82
        $region22: #{tpu_custom_call.1} parent=11 // pred_check_branch
          %209 = sbr.rel (%p207) target = $region24
        $region23: #{tpu_custom_call.1} parent=11 // pred_region
          _
        $region24: #{tpu_custom_call.1} parent=11 // pred_fallthru
          _
      $region12: #{tpu_custom_call.1} parent=5 // pred_fallthru
        _
      %p210 = scmp.lt.s32.totalorder %s19, 2
      // Predicated region
      $region25: #{tpu_custom_call.1} parent=5 // pred_check
        %p211 = pneg %p210
      $region26: #{tpu_custom_call.1} parent=5 // pred_check_branch
        %213 = sbr.rel (%p211) target = $region28
      $region27: #{tpu_custom_call.1} parent=5 // pred_region
        // Predicated region
        $region29: #{tpu_custom_call.1} parent=27 // pred_check
          %p214 = pneg %p102
        $region30: #{tpu_custom_call.1} parent=27 // pred_check_branch
          %216 = sbr.rel (%p214) target = $region32
        $region31: #{tpu_custom_call.1} parent=27 // pred_region
          %p217 = scmp.lt.s32.totalorder %s19, 1
          %s218 = scalar_select %p217, %s19, 1
          %s219 = smul.addr %s218, 10
          %s220 = smul.addr %s219, 8
          %s221 = scalar_lea.vmem %s3, %s220
        $region32: #{tpu_custom_call.1} parent=27 // pred_fallthru
          _
      $region28: #{tpu_custom_call.1} parent=5 // pred_fallthru
        _
      %p222 = scmp.le.s32.totalorder 1, %s19
      %p223 = scmp.lt.s32.totalorder %s19, 3
      %p224 = pnand %p222, %p223
      %p225 = pneg %p224
      // Predicated region
      $region33: #{tpu_custom_call.1} parent=5 // pred_check
        _
      $region34: #{tpu_custom_call.1} parent=5 // pred_check_branch
        %227 = sbr.rel (%p224) target = $region36
      $region35: #{tpu_custom_call.1} parent=5 // pred_region
        %s228 = ssub.s32 %s19, 1
        %p229 = pneg %p40
        %p230 = pneg %p37
        %p231 = pneg %p61
        %p232 = pneg %p58
        %p233 = pneg %p82
        %p234 = pneg %p79
        %p235 = scmp.lt.s32.totalorder %s24, 1
        %s236 = scalar_select %p235, %s24, 1
        %s237 = smul.addr %s236, 10
        %s238 = smul.addr %s237, 8
        %s239 = scalar_lea.vmem %s3, %s238
        %p240 = pneg %p108
        %p241 = pneg %p105
        %p242 = pneg %p134
        %p243 = pneg %p131
        %s244 = sand.u32 %s121, 1
        %s245 = scalar_lea.sflag [#allocation3], %s244
        %s246 = sand.u32 %s121, 1
        %s247 = smul.addr %s246, 16
        %s248 = scalar_lea.vmem [#allocation2], %s247
        %p249 = pneg %p160
        %p250 = pneg %p157
        %s251 = sand.u32 %s24, 1
        %s252 = scalar_lea.sflag [#allocation5], %s251
        %s253 = sand.u32 %s147, 1
        %s254 = scalar_lea.vmem [#allocation4], %s253
        %p255 = pneg %p186
        %p256 = pneg %p183
        %s257 = sand.u32 %s24, 1
        %s258 = scalar_lea.sflag [#allocation5], %s257
        %s259 = sand.u32 %s173, 1
        %s260 = scalar_lea.vmem [#allocation6], %s259
        %p261 = scmp.lt.s32.totalorder %s24, 1
        %s262 = scalar_select %p261, %s24, 1
        %s263 = smul.addr %s262, 10
        %s264 = smul.addr %s263, 8
        %s265 = scalar_lea.vmem %s3, %s264
        %v266 = vld [vmem:[%s0] sm:$0xff]
        %v267 = vld [vmem:[%s1] sm:$0x1]
        %v268 = vld [vmem:[%s265] sm:$0xff]
        %v269 = vld [vmem:[%s265 + $0x8] sm:$0xff]
        %v270 = vld [vmem:[%s265 + $0x10] sm:$0xff]
        %v271 = vld [vmem:[%s265 + $0x18] sm:$0xff]
        %v272 = vld [vmem:[%s265 + $0x20] sm:$0xff]
        %v273 = vld [vmem:[%s265 + $0x28] sm:$0xff]
        %v274 = vld [vmem:[%s265 + $0x30] sm:$0xff]
        %v275 = vld [vmem:[%s265 + $0x38] sm:$0xff]
        %v276 = vld [vmem:[%s265 + $0x40] sm:$0xf]
        %v277 = vld [vmem:[%s265 + $0x48] sm:$0xf]
        %vm278 = vcmask 293888
        %v280 = vsel %vm278, %v266, 0
        %vm282 = vcmask 1043456
        %v284 = vsel %vm282, %v276, 0
        %v287 = vsel %vm282, %v277, 0
        %289 = vmatprep.subr.mxu0 %v269
        %290 = vmatpush1.msra.mxu0 %v268
        %291 = vmatprep.subr.mxu0 %v271
        %292 = vmatpush1.msra.mxu0 %v270
        %293 = vmatprep.subr.mxu0 %v273
        %294 = vmatpush1.msra.mxu0 %v272
        %295 = vmatprep.subr.mxu0 %v275
        %296 = vmatpush1.msra.mxu0 %v274
        %297 = vmatprep.subr.mxu0 %v287
        %298 = vmatpush1.msra.mxu0 %v284
        %299 = vmatprep.subr.mxu0 0.0
        %300 = vmatpush1.msra.mxu0 0.0
        %301 = vmatprep.subr.mxu0 0.0
        %302 = vmatpush1.msra.mxu0 0.0
        %303 = vmatprep.subr.mxu0 0.0
        %304 = vmatpush1.msra.mxu0 0.0
        %305 = vmatprep.subr.mxu0 0.0
        %306 = vmatpush1.msra.mxu0 0.0
        %307 = vmatprep.subr.mxu0 0.0
        %308 = vmatpush1.msra.mxu0 0.0
        %309 = vmatprep.subr.mxu0 0.0
        %310 = vmatpush1.msra.mxu0 0.0
        %311 = vmatprep.subr.mxu0 0.0
        %312 = vmatpush1.msra.mxu0 0.0
        %313 = vmatprep.subr.mxu0 0.0
        %314 = vmatpush1.msra.mxu0 0.0
        %315 = vmatprep.subr.mxu0 0.0
        %316 = vmatpush1.msra.mxu0 0.0
        %317 = vmatprep.subr.mxu0 0.0
        %318 = vmatpush1.msra.mxu0 0.0
        %319 = vmatprep.subr.mxu0 0.0
        %320 = vmatpush1.msra.mxu0 0.0
        %321 = vmatprep.subr.mxu0 0.0
        %322 = vmatpush1.msra.mxu0 0.0
        %323 = vmatprep.subr.mxu0 0.0
        %324 = vmatpush1.msra.mxu0 0.0
        %325 = vmatprep.subr.mxu0 0.0
        %326 = vmatpush1.msra.mxu0 0.0
        %327 = vmatprep.subr.mxu0 0.0
        %328 = vmatpush1.msra.mxu0 0.0
        %329 = vmatprep.subr.mxu0 0.0
        %330 = vmatpush1.msra.mxu0 0.0
        %331 = vmatprep.subr.mxu0 0.0
        %332 = vmatpush1.msra.mxu0 0.0
        %333 = vmatprep.subr.mxu0 0.0
        %334 = vmatpush1.msra.mxu0 0.0
        %335 = vmatprep.subr.mxu0 0.0
        %336 = vmatpush1.msra.mxu0 0.0
        %337 = vmatprep.subr.mxu0 0.0
        %338 = vmatpush1.msra.mxu0 0.0
        %339 = vmatprep.subr.mxu0 0.0
        %340 = vmatpush1.msra.mxu0 0.0
        %341 = vmatprep.subr.mxu0 0.0
        %342 = vmatpush1.msra.mxu0 0.0
        %343 = vmatprep.subr.mxu0 0.0
        %344 = vmatpush1.msra.mxu0 0.0
        %345 = vmatprep.subr.mxu0 0.0
        %346 = vmatpush1.msra.mxu0 0.0
        %347 = vmatprep.subr.mxu0 0.0
        %348 = vmatpush1.msra.mxu0 0.0
        %349 = vmatprep.subr.mxu0 0.0
        %350 = vmatpush1.msra.mxu0 0.0
        %351 = vmatprep.subr.mxu0 0.0
        %352 = vmatpush1.msra.mxu0 0.0
        %353 = vmatprep.mubr.f32.mxu0 0.0
        %354 = vmatmul.mubr.f32.gmra.mrb[0].mxu0 %v280
        %v355 = vpop.f32.mrb[0].mxu0
        %v356 = vadd.f32 0.0, %v355
        %v357 = vpop.f32.mrb[0].mxu0
        %v358 = vadd.f32 0.0, %v357
        %359 = vdwg.mxu0
        %vm360 = vcmask 64512
        %v362 = vsel %vm360, %v267, 0
        %364 = vmatprep.subr.mxu0 0.0
        %365 = vmatpush1.msra.mxu0 %v266
        %366 = vmatprep.subr.mxu0 0.0
        %367 = vmatpush1.msra.mxu0 0.0
        %368 = vmatprep.subr.mxu0 0.0
        %369 = vmatpush1.msra.mxu0 0.0
        %370 = vmatprep.subr.mxu0 0.0
        %371 = vmatpush1.msra.mxu0 0.0
        %372 = vmatprep.subr.mxu0 0.0
        %373 = vmatpush1.msra.mxu0 0.0
        %374 = vmatprep.subr.mxu0 0.0
        %375 = vmatpush1.msra.mxu0 0.0
        %376 = vmatprep.subr.mxu0 0.0
        %377 = vmatpush1.msra.mxu0 0.0
        %378 = vmatprep.subr.mxu0 0.0
        %379 = vmatpush1.msra.mxu0 0.0
        %380 = vmatprep.subr.mxu0 0.0
        %381 = vmatpush1.msra.mxu0 0.0
        %382 = vmatprep.subr.mxu0 0.0
        %383 = vmatpush1.msra.mxu0 0.0
        %384 = vmatprep.subr.mxu0 0.0
        %385 = vmatpush1.msra.mxu0 0.0
        %386 = vmatprep.subr.mxu0 0.0
        %387 = vmatpush1.msra.mxu0 0.0
        %388 = vmatprep.subr.mxu0 0.0
        %389 = vmatpush1.msra.mxu0 0.0
        %390 = vmatprep.subr.mxu0 0.0
        %391 = vmatpush1.msra.mxu0 0.0
        %392 = vmatprep.subr.mxu0 0.0
        %393 = vmatpush1.msra.mxu0 0.0
        %394 = vmatprep.subr.mxu0 0.0
        %395 = vmatpush1.msra.mxu0 0.0
        %396 = vmatprep.subr.mxu0 0.0
        %397 = vmatpush1.msra.mxu0 0.0
        %398 = vmatprep.subr.mxu0 0.0
        %399 = vmatpush1.msra.mxu0 0.0
        %400 = vmatprep.subr.mxu0 0.0
        %401 = vmatpush1.msra.mxu0 0.0
        %402 = vmatprep.subr.mxu0 0.0
        %403 = vmatpush1.msra.mxu0 0.0
        %404 = vmatprep.subr.mxu0 0.0
        %405 = vmatpush1.msra.mxu0 0.0
        %406 = vmatprep.subr.mxu0 0.0
        %407 = vmatpush1.msra.mxu0 0.0
        %408 = vmatprep.subr.mxu0 0.0
        %409 = vmatpush1.msra.mxu0 0.0
        %410 = vmatprep.subr.mxu0 0.0
        %411 = vmatpush1.msra.mxu0 0.0
        %412 = vmatprep.subr.mxu0 0.0
        %413 = vmatpush1.msra.mxu0 0.0
        %414 = vmatprep.subr.mxu0 0.0
        %415 = vmatpush1.msra.mxu0 0.0
        %416 = vmatprep.subr.mxu0 0.0
        %417 = vmatpush1.msra.mxu0 0.0
        %418 = vmatprep.subr.mxu0 0.0
        %419 = vmatpush1.msra.mxu0 0.0
        %420 = vmatprep.subr.mxu0 0.0
        %421 = vmatpush1.msra.mxu0 0.0
        %422 = vmatprep.subr.mxu0 0.0
        %423 = vmatpush1.msra.mxu0 0.0
        %424 = vmatprep.subr.mxu0 0.0
        %425 = vmatpush1.msra.mxu0 0.0
        %426 = vmatprep.subr.mxu0 0.0
        %427 = vmatpush1.msra.mxu0 0.0
        %428 = vmatprep.mubr.f32.mxu0 0.0
        %429 = vmatmul.mubr.f32.gmra.mrb[0].mxu0 %v362
        %v430 = vpop.f32.mrb[0].mxu0
        %v431 = vadd.f32 0.0, %v430
        %v432 = vpop.f32.mrb[0].mxu0
        %433 = vdwg.mxu0
        %v434 = vmul.f32 %v431, %v431
        %vm435 = vcmask 286720
        %v436 = vsel %vm435, %v434, 0.0
        %437 = vadd.xlane.f32.xlu0 %v436
        %v438 = vpop.xlane.xlu0 %437
        %v439 = vrot.slane %v438, 4
        %v440 = vadd.f32 %v438, %v439
        %v441 = vrot.slane %v440, 2
        %v442 = vadd.f32 %v440, %v441
        %v443 = vrot.slane %v442, 1
        %v444 = vadd.f32 %v442, %v443
        %s445 = vtos %v444
        %v446 = vstv %s445
        %v447 = vrsqrt.pop %v446
        %v448 = vmul.f32 %v446, %v447
        %vm449 = vcmp.eq.f32.partialorder %v446, inf
        %v450 = vsel %vm449, %v446, %v448
        %vm451 = vcmp.eq.f32.partialorder %v446, 0.0
        %v452 = vand.u32 %v446, 2147483648
        %v453 = vsel %vm451, %v452, %v450
        %v454 = vadd.f32 %v453, 1e-12
        %v455 = vrcp.pop %v454
        %v456 = vmul.f32 %v431, %v455
        %v458 = vsel %vm278, %v456, 0
        %460 = vmatprep.subr.mxu0 0.0
        %461 = vmatpush1.xpose.msra.mxu0 %v280
        %462 = vmatprep.subr.mxu0 0.0
        %463 = vmatpush1.xpose.msra.mxu0 0.0
        %464 = vmatprep.subr.mxu0 0.0
        %465 = vmatpush1.xpose.msra.mxu0 0.0
        %466 = vmatprep.subr.mxu0 0.0
        %467 = vmatpush1.xpose.msra.mxu0 0.0
        %468 = vmatprep.subr.mxu0 0.0
        %469 = vmatpush1.xpose.msra.mxu0 0.0
        %470 = vmatprep.subr.mxu0 0.0
        %471 = vmatpush1.xpose.msra.mxu0 0.0
        %472 = vmatprep.subr.mxu0 0.0
        %473 = vmatpush1.xpose.msra.mxu0 0.0
        %474 = vmatprep.subr.mxu0 0.0
        %475 = vmatpush1.xpose.msra.mxu0 0.0
        %476 = vmatprep.subr.mxu0 0.0
        %477 = vmatpush1.xpose.msra.mxu0 0.0
        %478 = vmatprep.subr.mxu0 0.0
        %479 = vmatpush1.xpose.msra.mxu0 0.0
        %480 = vmatprep.subr.mxu0 0.0
        %481 = vmatpush1.xpose.msra.mxu0 0.0
        %482 = vmatprep.subr.mxu0 0.0
        %483 = vmatpush1.xpose.msra.mxu0 0.0
        %484 = vmatprep.subr.mxu0 0.0
        %485 = vmatpush1.xpose.msra.mxu0 0.0
        %486 = vmatprep.subr.mxu0 0.0
        %487 = vmatpush1.xpose.msra.mxu0 0.0
        %488 = vmatprep.subr.mxu0 0.0
        %489 = vmatpush1.xpose.msra.mxu0 0.0
        %490 = vmatprep.subr.mxu0 0.0
        %491 = vmatpush1.xpose.msra.mxu0 0.0
        %492 = vmatprep.subr.mxu0 0.0
        %493 = vmatpush1.xpose.msra.mxu0 0.0
        %494 = vmatprep.subr.mxu0 0.0
        %495 = vmatpush1.xpose.msra.mxu0 0.0
        %496 = vmatprep.subr.mxu0 0.0
        %497 = vmatpush1.xpose.msra.mxu0 0.0
        %498 = vmatprep.subr.mxu0 0.0
        %499 = vmatpush1.xpose.msra.mxu0 0.0
        %500 = vmatprep.subr.mxu0 0.0
        %501 = vmatpush1.xpose.msra.mxu0 0.0
        %502 = vmatprep.subr.mxu0 0.0
        %503 = vmatpush1.xpose.msra.mxu0 0.0
        %504 = vmatprep.subr.mxu0 0.0
        %505 = vmatpush1.xpose.msra.mxu0 0.0
        %506 = vmatprep.subr.mxu0 0.0
        %507 = vmatpush1.xpose.msra.mxu0 0.0
        %508 = vmatprep.subr.mxu0 0.0
        %509 = vmatpush1.xpose.msra.mxu0 0.0
        %510 = vmatprep.subr.mxu0 0.0
        %511 = vmatpush1.xpose.msra.mxu0 0.0
        %512 = vmatprep.subr.mxu0 0.0
        %513 = vmatpush1.xpose.msra.mxu0 0.0
        %514 = vmatprep.subr.mxu0 0.0
        %515 = vmatpush1.xpose.msra.mxu0 0.0
        %516 = vmatprep.subr.mxu0 0.0
        %517 = vmatpush1.xpose.msra.mxu0 0.0
        %518 = vmatprep.subr.mxu0 0.0
        %519 = vmatpush1.xpose.msra.mxu0 0.0
        %520 = vmatprep.subr.mxu0 0.0
        %521 = vmatpush1.xpose.msra.mxu0 0.0
        %522 = vmatprep.subr.mxu0 0.0
        %523 = vmatpush1.xpose.msra.mxu0 0.0
        %524 = vmatprep.mubr.f32.mxu0 0.0
        %525 = vmatmul.mubr.f32.gmra.mrb[0].mxu0 %v458
        %v526 = vpop.f32.mrb[0].mxu0
        %v527 = vadd.f32 0.0, %v526
        %v528 = vpop.f32.mrb[0].mxu0
        %529 = vdwg.mxu0
        %v530 = vmul.f32 %v527, %v527
        %vm531 = vcmask 57344
        %v532 = vsel %vm531, %v530, 0.0
        %533 = vadd.xlane.f32.xlu0 %v532
        %v534 = vpop.xlane.xlu0 %533
        %v535 = vrot.slane %v534, 4
        %v536 = vadd.f32 %v534, %v535
        %v537 = vrot.slane %v536, 2
        %v538 = vadd.f32 %v536, %v537
        %v539 = vrot.slane %v538, 1
        %v540 = vadd.f32 %v538, %v539
        %s541 = vtos %v540
        %v542 = vstv %s541
        %v543 = vrsqrt.pop %v542
        %v544 = vmul.f32 %v542, %v543
        %vm545 = vcmp.eq.f32.partialorder %v542, inf
        %v546 = vsel %vm545, %v542, %v544
        %vm547 = vcmp.eq.f32.partialorder %v542, 0.0
        %v548 = vand.u32 %v542, 2147483648
        %v549 = vsel %vm547, %v548, %v546
        %v550 = vadd.f32 %v549, 1e-12
        %v551 = vrcp.pop %v550
        %v552 = vmul.f32 %v527, %v551
        %v553 = vmul.f32 %v552, %v527
        %v554 = vsel %vm531, %v553, 0.0
        %555 = vadd.xlane.f32.xlu0 %v554
        %v556 = vpop.xlane.xlu0 %555
        %v557 = vrot.slane %v556, 4
        %v558 = vadd.f32 %v556, %v557
        %v559 = vrot.slane %v558, 2
        %v560 = vadd.f32 %v558, %v559
        %v561 = vrot.slane %v560, 1
        %v562 = vadd.f32 %v560, %v561
        %s563 = vtos %v562
        %v564 = vstv %s563
        %v565 = vrcp.pop %v564
        %v566 = vmul.f32 %v356, %v565
        %v567 = vmul.f32 %v358, %v565
        %v568 = vld [vmem:[%s2] sm:$0xff]
        %570 = vset.pattern.permute.xlu0 0
        %571 = vperm.xlu0 %570, %v568
        %v572 = vpop.permute.xlu0 %571
        %v574 = vadd.f32 %v566, %v572
        %v575 = vadd.f32 %v567, %v572
        %576 = vst [vmem:[%s248] sm:$0xff] %v574
        %577 = vst [vmem:[%s248 + $0x8] sm:$0xff] %v575
        %578 = vst.msk [vmem:[%s254] sm:$0x1] %vm531, %v552
        %579 = vst.msk [vmem:[%s260] sm:$0x1] %vm435, %v456
        %s580 = sand.u32 %s121, 1
        %s581 = scalar_lea.sflag [#allocation3], %s580
        %s582 = sand.u32 %s121, 1
        %s583 = smul.addr %s582, 16
        %s584 = scalar_lea.vmem [#allocation2], %s583
        %s585 = sand.u32 %s24, 1
        %s586 = scalar_lea.sflag [#allocation5], %s585
        %s587 = sand.u32 %s147, 1
        %s588 = scalar_lea.vmem [#allocation4], %s587
        %s589 = sand.u32 %s24, 1
        %s590 = scalar_lea.sflag [#allocation5], %s589
        %s591 = sand.u32 %s173, 1
        %s592 = scalar_lea.vmem [#allocation6], %s591
        // Predicated region
        $region37: #{tpu_custom_call.1} parent=35 // pred_check
          %p593 = pneg %p131
        $region38: #{tpu_custom_call.1} parent=35 // pred_check_branch
          %595 = sbr.rel (%p593) target = $region40
        $region39: #{tpu_custom_call.1} parent=35 // pred_region
          %s597 = ssub.s32 256, 256
          %598 = vsyncadd %s581, %s597
          %s599 = smul.addr %s24, 2
          %s600 = smul.addr %s599, 128
          %s601 = scalar_lea.hbm %s4, %s600
          %s603 = sshll.u32 %s584, 4
          %s604 = int_to_ptr.vmem [resolvable:$true] %s603
          %606 = dma.vmem_to_hbm [thread:$0]  %s604, 256, %s601, %s581
        $region40: #{tpu_custom_call.1} parent=35 // pred_fallthru
          _
        // Predicated region
        $region41: #{tpu_custom_call.1} parent=35 // pred_check
          %p607 = pneg %p157
        $region42: #{tpu_custom_call.1} parent=35 // pred_check_branch
          %609 = sbr.rel (%p607) target = $region44
        $region43: #{tpu_custom_call.1} parent=35 // pred_region
          %s611 = ssub.s32 16, 16
          %612 = vsyncadd %s586, %s611
          %s613 = smul.addr %s24, 16
          %s614 = scalar_lea.hbm %s5, %s613
          %s616 = sshll.u32 %s588, 4
          %s617 = int_to_ptr.vmem [resolvable:$true] %s616
          %619 = dma.vmem_to_hbm [thread:$0]  %s617, 16, %s614, %s586
        $region44: #{tpu_custom_call.1} parent=35 // pred_fallthru
          _
        // Predicated region
        $region45: #{tpu_custom_call.1} parent=35 // pred_check
          %p620 = pneg %p183
        $region46: #{tpu_custom_call.1} parent=35 // pred_check_branch
          %622 = sbr.rel (%p620) target = $region48
        $region47: #{tpu_custom_call.1} parent=35 // pred_region
          %s624 = ssub.s32 16, 16
          %625 = vsyncadd %s590, %s624
          %s626 = smul.addr %s24, 16
          %s627 = scalar_lea.hbm %s6, %s626
          %s629 = sshll.u32 %s592, 4
          %s630 = int_to_ptr.vmem [resolvable:$true] %s629
          %632 = dma.vmem_to_hbm [thread:$0]  %s630, 16, %s627, %s590
        $region48: #{tpu_custom_call.1} parent=35 // pred_fallthru
          _
      $region36: #{tpu_custom_call.1} parent=5 // pred_fallthru
        _
      %p633 = scmp.le.s32.totalorder 2, %s19
      // Predicated region
      $region49: #{tpu_custom_call.1} parent=5 // pred_check
        %p634 = pneg %p633
      $region50: #{tpu_custom_call.1} parent=5 // pred_check_branch
        %636 = sbr.rel (%p634) target = $region52
      $region51: #{tpu_custom_call.1} parent=5 // pred_region
        %s637 = ssub.s32 %s19, 2
        // Predicated region
        $region53: #{tpu_custom_call.1} parent=51 // pred_check
          %p638 = pneg %p137
        $region54: #{tpu_custom_call.1} parent=51 // pred_check_branch
          %640 = sbr.rel (%p638) target = $region56
        $region55: #{tpu_custom_call.1} parent=51 // pred_region
          %s641 = sand.u32 %s122, 1
          %s642 = scalar_lea.sflag [#allocation3], %s641
          %s643 = sand.u32 %s122, 1
          %s644 = smul.addr %s643, 16
          %s645 = scalar_lea.vmem [#allocation2], %s644
          %646 = dma.done %s642, 256
        $region56: #{tpu_custom_call.1} parent=51 // pred_fallthru
          _
        // Predicated region
        $region57: #{tpu_custom_call.1} parent=51 // pred_check
          %p647 = pneg %p163
        $region58: #{tpu_custom_call.1} parent=51 // pred_check_branch
          %649 = sbr.rel (%p647) target = $region60
        $region59: #{tpu_custom_call.1} parent=51 // pred_region
          %s650 = sand.u32 %s25, 1
          %s651 = scalar_lea.sflag [#allocation5], %s650
          %s652 = sand.u32 %s148, 1
          %s653 = scalar_lea.vmem [#allocation4], %s652
          %654 = dma.done %s651, 16
        $region60: #{tpu_custom_call.1} parent=51 // pred_fallthru
          _
        // Predicated region
        $region61: #{tpu_custom_call.1} parent=51 // pred_check
          %p655 = pneg %p189
        $region62: #{tpu_custom_call.1} parent=51 // pred_check_branch
          %657 = sbr.rel (%p655) target = $region64
        $region63: #{tpu_custom_call.1} parent=51 // pred_region
          %s658 = sand.u32 %s25, 1
          %s659 = scalar_lea.sflag [#allocation5], %s658
          %s660 = sand.u32 %s174, 1
          %s661 = scalar_lea.vmem [#allocation6], %s660
          %662 = dma.done %s659, 16
        $region64: #{tpu_custom_call.1} parent=51 // pred_fallthru
          _
      $region52: #{tpu_custom_call.1} parent=5 // pred_fallthru
        _
    $region6: #{tpu_custom_call.1} parent=1 // loop_footer
      %s23 = sadd.s32 1, %s19
    $region7: #{tpu_custom_call.1} parent=1 // loop_footer_branch
      %18 = sbr.rel target = $region3
    $region8: #{tpu_custom_call.1} parent=1 // loop_exit
      _
    %663 = vsyncpa [#allocation3], 1
    %s664 = scalar_lea.sflag [#allocation3], 1
    %665 = vsyncpa %s664, 1
    %666 = vsyncpa [#allocation5], 1
    %s667 = scalar_lea.sflag [#allocation5], 1
    %668 = vsyncpa %s667, 1

</llo_original>
